<compile_context>
chip_gen: v7x
topology: tpu7x:2x2x1
jax: 0.10.0
libtpu: 0.0.40
codegen_flags: <defaults>
</compile_context>

<pallas_src>
import functools

import jax
import jax.numpy as jnp
from jax.experimental import pallas as pl
from jax.experimental.pallas import tpu as pltpu

LANE = 128
MAX_TILE_ROWS = 8192                    # (8192, 128) f32 block = 4 MiB / input / buffer
VMEM_LIMIT_BYTES = 48 * 1024 * 1024     # > v5e 16 MiB scoped default, < v7x 64 MiB phys


def _tensorcores_per_chip() -> int:
    """2 on v7x-class chips (two TensorCores per chip), 1 on v5e/v6e/unknown."""
    try:
        kind = jax.devices()[0].device_kind.lower()
    except Exception:
        return 1
    return 2 if ("v7" in kind or "7x" in kind) else 1


def _l1_kernel(a_ref, b_ref, o_ref, acc_ref, *,
               apply_sigmoid: bool, tile_rows: int, tiles_per_split: int,
               rows_valid: int):
    """Grid = (n_splits, tiles_per_split). Axis 0 is the per-core split (partial sum),
    axis 1 is the reduction walk over row-tiles. acc_ref is an (8,128) f32 VMEM
    accumulator resident across the reduction axis; o_ref[c,0] gets the split's sum."""
    c = pl.program_id(0)
    i = pl.program_id(1)

    @pl.when(i == 0)
    def _():
        acc_ref[...] = jnp.zeros_like(acc_ref)

    a = a_ref[...].astype(jnp.float32)
    b = b_ref[...].astype(jnp.float32)
    if apply_sigmoid:
        a = jax.nn.sigmoid(a)
        b = jax.nn.sigmoid(b)
    diff = jnp.abs(a - b)

    # Does this block extend past the real array (overhanging tail or phantom tile)?
    base_row = (c * tiles_per_split + i) * tile_rows
    needs_mask = base_row + tile_rows > rows_valid

    # Hot path: fully valid tile — no iota / compare / select, just the sublane-aligned
    # partial reduce into the (8,128) accumulator (VPU work with slack under HBM).
    @pl.when(jnp.logical_not(needs_mask))
    def _():
        acc_ref[...] += jnp.sum(diff.reshape(tile_rows // 8, 8, LANE), axis=0)

    # Tail path (at most once per split): mask rows past the real array.  Pallas pads
    # overhanging blocks with unspecified bytes (could be NaN after sigmoid), so those
    # rows are selected to exactly 0 before accumulating.
    @pl.when(needs_mask)
    def _():
        limit = rows_valid - base_row            # scalar; iota compared directly
        row_ids = jax.lax.broadcasted_iota(jnp.int32, (tile_rows, LANE), 0)
        masked = jnp.where(row_ids < limit, diff, 0.0)
        acc_ref[...] += jnp.sum(masked.reshape(tile_rows // 8, 8, LANE), axis=0)

    @pl.when(i == pl.num_programs(1) - 1)
    def _():
        o_ref[0, 0] = jnp.sum(acc_ref[...])


def puzzle_reg_loss(full_cam: jax.Array, tiled_cam: jax.Array, *, logits: bool = False) -> jax.Array:
    """Mean L1 distance between full_cam and tiled_cam (optionally sigmoid'ed first)."""
    assert full_cam.shape == tiled_cam.shape, "inputs must have identical shapes"
    n = full_cam.size
    assert n > 0, "PuzzleRegLoss on empty inputs would divide by zero"

    a = full_cam.reshape(-1)
    b = tiled_cam.reshape(-1)

    # Pad (with zeros) only up to the next 128-lane boundary; identical zero padding on
    # both sides contributes |sigmoid(0)-sigmoid(0)| = 0.  Common CAM shapes (H*W a
    # multiple of 128) take the zero-copy path and never hit this concatenate.
    pad = (-n) % LANE
    if pad:
        a = jnp.concatenate([a, jnp.zeros((pad,), a.dtype)])
        b = jnp.concatenate([b, jnp.zeros((pad,), b.dtype)])

    rows = (n + pad) // LANE
    a2 = a.reshape(rows, LANE)
    b2 = b.reshape(rows, LANE)

    # Multiple of 32 rows keeps the block tile-legal for f32/bf16/int8 alike.
    tile_rows = min(MAX_TILE_ROWS, ((rows + 31) // 32) * 32)
    n_tiles = -(-rows // tile_rows)

    # Split only when it buys real parallelism: 2 TensorCores on v7x, otherwise a
    # split is just a serial outer loop plus a possible phantom-tile DMA.
    n_splits = _tensorcores_per_chip() if n_tiles >= 2 else 1
    tiles_per_split = -(-n_tiles // n_splits)

    # Clamp phantom tiles (odd n_tiles split 2 ways) to the last real tile; their
    # contribution is zeroed by the in-kernel row mask (nominal row index >= rows).
    def in_map(c, i):
        return (jnp.minimum(c * tiles_per_split + i, n_tiles - 1), 0)

    kernel = functools.partial(
        _l1_kernel,
        apply_sigmoid=logits,
        tile_rows=tile_rows,
        tiles_per_split=tiles_per_split,
        rows_valid=rows,
    )

    if n_splits > 1:
        # Explicit per-TensorCore sharding of the split axis (v7x).
        dim_sem = (pltpu.CORE_PARALLEL, pltpu.ARBITRARY)
    else:
        dim_sem = ("arbitrary", "arbitrary")

    itemsize = jnp.dtype(full_cam.dtype).itemsize
    cost = pl.CostEstimate(
        flops=3 * n,                                    # sub + abs + accumulate
        transcendentals=(2 * n) if logits else 0,       # two sigmoids per element
        bytes_accessed=2 * n * itemsize,                # streaming reads dominate
    )

    partials = pl.pallas_call(
        kernel,
        out_shape=jax.ShapeDtypeStruct((n_splits, 1), jnp.float32),
        grid_spec=pltpu.PrefetchScalarGridSpec(
            num_scalar_prefetch=0,
            grid=(n_splits, tiles_per_split),
            in_specs=[
                pl.BlockSpec((tile_rows, LANE), in_map),
                pl.BlockSpec((tile_rows, LANE), in_map),
            ],
            out_specs=pl.BlockSpec(
                (1, 1), lambda c, i: (c, 0), memory_space=pltpu.MemorySpace.SMEM
            ),
            scratch_shapes=[pltpu.VMEM((8, LANE), jnp.float32)],
        ),
        compiler_params=pltpu.CompilerParams(
            dimension_semantics=dim_sem,
            vmem_limit_bytes=VMEM_LIMIT_BYTES,
        ),
        cost_estimate=cost,
    )(a2, b2)

    return jnp.sum(partials) / n


def puzzle_reg_loss_ref(full_cam, tiled_cam, *, logits=False):
    a = full_cam.astype(jnp.float32)
    b = tiled_cam.astype(jnp.float32)
    if logits:
        a = jax.nn.sigmoid(a)
        b = jax.nn.sigmoid(b)
    return jnp.mean(jnp.abs(a - b))


if __name__ == "__main__":
    key = jax.random.PRNGKey(0)
    k1, k2, k3, k4 = jax.random.split(key, 4)

    # CAM-like inputs in NCHW: batch=2, channels=4, spatial=16 (lane-aligned, zero-copy path)
    full_cam = jax.random.normal(k1, (2, 4, 16, 16), dtype=jnp.float32)
    tiled_cam = jax.random.normal(k2, (2, 4, 16, 16), dtype=jnp.float32)

    loss = jax.block_until_ready(puzzle_reg_loss(full_cam, tiled_cam, logits=False))
    ref = puzzle_reg_loss_ref(full_cam, tiled_cam, logits=False)
    assert jnp.allclose(loss, ref, atol=1e-5, rtol=1e-5), (loss, ref)

    loss_sig = jax.block_until_ready(puzzle_reg_loss(full_cam, tiled_cam, logits=True))
    ref_sig = puzzle_reg_loss_ref(full_cam, tiled_cam, logits=True)
    assert jnp.allclose(loss_sig, ref_sig, atol=1e-5, rtol=1e-5), (loss_sig, ref_sig)

    # Ragged shape (n not a multiple of 128) exercises the pad + masked-tail branch.
    full_r = jax.random.normal(k3, (2, 3, 15, 17), dtype=jnp.float32)
    tiled_r = jax.random.normal(k4, (2, 3, 15, 17), dtype=jnp.float32)
    loss_r = jax.block_until_ready(puzzle_reg_loss(full_r, tiled_r, logits=True))
    ref_r = puzzle_reg_loss_ref(full_r, tiled_r, logits=True)
    assert jnp.allclose(loss_r, ref_r, atol=1e-5, rtol=1e-5), (loss_r, ref_r)

    print("KERNEL_OK")
</pallas_src>

<mosaic_0001>
module attributes {stable_mosaic.version = 11 : i64} {
  func.func @_l1_kernel(%arg0: i32, %arg1: i32, %arg2: memref<32x128xf32, #tpu.memory_space<vmem>>, %arg3: memref<32x128xf32, #tpu.memory_space<vmem>>, %arg4: memref<1x1xf32, #tpu.memory_space<smem>>, %arg5: memref<8x128xf32, #tpu.memory_space<vmem>>) attributes {dimension_semantics = [#tpu.dimension_semantics<arbitrary>, #tpu.dimension_semantics<arbitrary>], iteration_bounds = array<i64: 1, 1>, scalar_prefetch = 0 : i64, scratch_operands = 1 : i64, tpu.core_type = #tpu.core_type<tc>, window_params = [{transform_indices = @transform_0, window_bounds = array<i64: 32, 128>}, {transform_indices = @transform_1, window_bounds = array<i64: 32, 128>}, {transform_indices = @transform_2, window_bounds = array<i64: 1, 1>}]} {
    %c0_i32 = arith.constant 0 : i32
    %0 = arith.cmpi eq, %arg1, %c0_i32 : i32
    %1 = arith.extui %0 : i1 to i32
    %c0_i32_0 = arith.constant 0 : i32
    %2 = arith.cmpi ne, %1, %c0_i32_0 : i32
    scf.if %2 {
      %cst = arith.constant 0.000000e+00 : f32
      %20 = vector.broadcast %cst : f32 to vector<8x128xf32>
      %c0_9 = arith.constant 0 : index
      %c0_10 = arith.constant 0 : index
      %21 = vector.load %arg5[%c0_9, %c0_10] : memref<8x128xf32, #tpu.memory_space<vmem>>, vector<8x128xf32>
      tpu.vector_store %arg5[%c0_9, %c0_10], %20 {strides = array<i32>} : memref<8x128xf32, #tpu.memory_space<vmem>>, vector<8x128xf32>,
    } else {
    }
    %c0 = arith.constant 0 : index
    %c0_1 = arith.constant 0 : index
    %3 = vector.load %arg2[%c0, %c0_1] : memref<32x128xf32, #tpu.memory_space<vmem>>, vector<32x128xf32>
    %c0_2 = arith.constant 0 : index
    %c0_3 = arith.constant 0 : index
    %4 = vector.load %arg3[%c0_2, %c0_3] : memref<32x128xf32, #tpu.memory_space<vmem>>, vector<32x128xf32>
    %5 = arith.subf %3, %4 : vector<32x128xf32>
    %6 = math.absf %5 : vector<32x128xf32>
    %c1_i32 = arith.constant 1 : i32
    %7 = arith.muli %arg0, %c1_i32 : i32
    %8 = arith.addi %7, %arg1 : i32
    %c32_i32 = arith.constant 32 : i32
    %9 = arith.muli %8, %c32_i32 : i32
    %c32_i32_4 = arith.constant 32 : i32
    %10 = arith.addi %9, %c32_i32_4 : i32
    %c16_i32 = arith.constant 16 : i32
    %11 = arith.cmpi sgt, %10, %c16_i32 : i32
    %true = arith.constant true
    %12 = arith.xori %11, %true : i1
    %13 = arith.extui %12 : i1 to i32
    %c0_i32_5 = arith.constant 0 : i32
    %14 = arith.cmpi ne, %13, %c0_i32_5 : i32
    scf.if %14 {
      %c0_9 = arith.constant 0 : index
      %c0_10 = arith.constant 0 : index
      %20 = vector.load %arg5[%c0_9, %c0_10] : memref<8x128xf32, #tpu.memory_space<vmem>>, vector<8x128xf32>
      %21 = vector.shape_cast %6 : vector<32x128xf32> to vector<4x8x128xf32>
      %cst = arith.constant dense<0.000000e+00> : vector<8x128xf32>
      %22 = vector.multi_reduction <add>, %21, %cst [0] : vector<4x8x128xf32> to vector<8x128xf32>
      %23 = arith.addf %20, %22 : vector<8x128xf32>
      %c0_11 = arith.constant 0 : index
      %c0_12 = arith.constant 0 : index
      %24 = vector.load %arg5[%c0_11, %c0_12] : memref<8x128xf32, #tpu.memory_space<vmem>>, vector<8x128xf32>
      tpu.vector_store %arg5[%c0_11, %c0_12], %23 {strides = array<i32>} : memref<8x128xf32, #tpu.memory_space<vmem>>, vector<8x128xf32>,
    } else {
    }
    %15 = arith.extui %11 : i1 to i32
    %c0_i32_6 = arith.constant 0 : i32
    %16 = arith.cmpi ne, %15, %c0_i32_6 : i32
    scf.if %16 {
      %c16_i32_9 = arith.constant 16 : i32
      %20 = arith.subi %c16_i32_9, %9 : i32
      %21 = tpu.iota {dimensions = array<i32: 0>} : vector<32x128xi32>
      %22 = vector.broadcast %20 : i32 to vector<32x128xi32>
      %23 = arith.cmpi slt, %21, %22 : vector<32x128xi32>
      %cst = arith.constant 0.000000e+00 : f32
      %24 = vector.broadcast %cst : f32 to vector<32x128xf32>
      %25 = arith.select %23, %6, %24 : vector<32x128xi1>, vector<32x128xf32>
      %c0_10 = arith.constant 0 : index
      %c0_11 = arith.constant 0 : index
      %26 = vector.load %arg5[%c0_10, %c0_11] : memref<8x128xf32, #tpu.memory_space<vmem>>, vector<8x128xf32>
      %27 = vector.shape_cast %25 : vector<32x128xf32> to vector<4x8x128xf32>
      %cst_12 = arith.constant dense<0.000000e+00> : vector<8x128xf32>
      %28 = vector.multi_reduction <add>, %27, %cst_12 [0] : vector<4x8x128xf32> to vector<8x128xf32>
      %29 = arith.addf %26, %28 : vector<8x128xf32>
      %c0_13 = arith.constant 0 : index
      %c0_14 = arith.constant 0 : index
      %30 = vector.load %arg5[%c0_13, %c0_14] : memref<8x128xf32, #tpu.memory_space<vmem>>, vector<8x128xf32>
      tpu.vector_store %arg5[%c0_13, %c0_14], %29 {strides = array<i32>} : memref<8x128xf32, #tpu.memory_space<vmem>>, vector<8x128xf32>,
    } else {
    }
    %c0_i32_7 = arith.constant 0 : i32
    %17 = arith.cmpi eq, %arg1, %c0_i32_7 : i32
    %18 = arith.extui %17 : i1 to i32
    %c0_i32_8 = arith.constant 0 : i32
    %19 = arith.cmpi ne, %18, %c0_i32_8 : i32
    scf.if %19 {
      %c0_9 = arith.constant 0 : index
      %c0_10 = arith.constant 0 : index
      %20 = vector.load %arg5[%c0_9, %c0_10] : memref<8x128xf32, #tpu.memory_space<vmem>>, vector<8x128xf32>
      %21 = vector.shape_cast %20 : vector<8x128xf32> to vector<1x8x128xf32>
      %cst = arith.constant dense<0.000000e+00> : vector<1xf32>
      %22 = vector.multi_reduction <add>, %21, %cst [1, 2] : vector<1x8x128xf32> to vector<1xf32>
      %23 = vector.shape_cast %22 : vector<1xf32> to vector<1x1x1xf32>
      %24 = vector.extract %23[0, 0, 0] : f32 from vector<1x1x1xf32>
      %c0_11 = arith.constant 0 : index
      %c0_12 = arith.constant 0 : index
      %25 = memref.load %arg4[%c0_11, %c0_12] : memref<1x1xf32, #tpu.memory_space<smem>>
      memref.store %24, %arg4[%c0_11, %c0_12] : memref<1x1xf32, #tpu.memory_space<smem>>
    } else {
    }
    return
  }
  func.func @transform_0(%arg0: i32, %arg1: i32) -> (i32, i32) {
    %c1_i32 = arith.constant 1 : i32
    %0 = arith.muli %arg0, %c1_i32 : i32
    %1 = arith.addi %0, %arg1 : i32
    %c0_i32 = arith.constant 0 : i32
    %2 = arith.minsi %1, %c0_i32 : i32
    %c0_i32_0 = arith.constant 0 : i32
    %c0_i32_1 = arith.constant 0 : i32
    return %2, %c0_i32_0 : i32, i32
  }
  func.func @transform_1(%arg0: i32, %arg1: i32) -> (i32, i32) {
    %c1_i32 = arith.constant 1 : i32
    %0 = arith.muli %arg0, %c1_i32 : i32
    %1 = arith.addi %0, %arg1 : i32
    %c0_i32 = arith.constant 0 : i32
    %2 = arith.minsi %1, %c0_i32 : i32
    %c0_i32_0 = arith.constant 0 : i32
    %c0_i32_1 = arith.constant 0 : i32
    return %2, %c0_i32_0 : i32, i32
  }
  func.func @transform_2(%arg0: i32, %arg1: i32) -> (i32, i32) {
    %c0_i32 = arith.constant 0 : i32
    %c0_i32_0 = arith.constant 0 : i32
    return %arg0, %c0_i32 : i32, i32
  }
}

</mosaic_0001>

<llo_original>
// kernel: tpu_custom_call.1
$region0: #{tpu_custom_call.1}
  #allocation0 [shape = 'u32[]', space=smem, size = 0x4, offset = 0x4, fixed_abs, tag = 'smem constant byte address 0x4 - core index']
  #allocation1 [shape = 'u32[144,128]{1,0:T(1,128)}', space=vmem, size = 0x12000, scoped, tag = 'internal scratch']
  #allocation2 [shape = 'f32[8,128]{1,0:T(8,128)}', space=vmem, size = 0x1000, scoped, tag = 'scratch operand']
  %s0 = inlined_call_operand.hbm [shape: f32[16,128], index: 0, kind: input, shape index: {}]
  %s1 = inlined_call_operand.hbm [shape: f32[16,128], index: 1, kind: input, shape index: {}]
  %s2 = inlined_call_operand.hbm [shape: f32[1,1], index: 2, kind: output, shape index: {}]
  %s3 = sld [smem:[#allocation0]]
  $region42: #{tpu_custom_call.1} parent=0
    _
  %s5 = ssub.s32 1, %s3
  %s6 = scalar_select 0, %s5, %s3
  $region1: #{tpu_custom_call.1} parent=0
    #allocation3 [shape = 'u8[16384]{0}', space=vmem, size = 0x4000, scoped, tag = 'input window, operand 0, single buffered']
    #allocation4 [shape = 's32[1]{0}', space=sflag, size = 0x4, scoped, tag = 'scoped memory for tpu_custom_call.1']
    #allocation5 [shape = 's32[1]{0}', space=sflag, size = 0x4, scoped, tag = 'scoped memory for tpu_custom_call.1']
    #allocation6 [shape = 'u8[16384]{0}', space=vmem, size = 0x4000, scoped, tag = 'input window, operand 1, single buffered']
    #allocation7 [shape = 's32[1]{0}', space=sflag, size = 0x4, scoped, tag = 'scoped memory for tpu_custom_call.1']
    #allocation8 [shape = 'u8[512]{0}', space=smem, size = 0x200, scoped, tag = 'output window, operand 0, single buffered']
    %7 = vsyncpa [#allocation4], 0
    %8 = vsyncpa [#allocation7], 0
    %9 = vsyncpa [#allocation5], 0
    // Predicated region
    $region2: #{tpu_custom_call.1} parent=1 // pred_check
      _
    $region3: #{tpu_custom_call.1} parent=1 // pred_check_branch
      %11 = sbr.rel (0) target = $region5
    $region4: #{tpu_custom_call.1} parent=1 // pred_region
      %s12 = sadd.s32 0, 0
      %p13 = scmp.lt.s32.totalorder %s12, 0
      %s14 = scalar_select %p13, %s12, 0
      %s15 = smul.u32 4, %s14
      %s16 = ssub.s32 2, %s15
      %s17 = smul.u32 128, %s16
      %s19 = ssub.s32 512, %s17
      %20 = vsyncadd [#allocation4], %s19
      %p21 = scmp.ne.s32.totalorder 0, %s17
      %s22 = smul.addr %s15, 128
      %s23 = scalar_lea.hbm %s0, %s22
      %s24 = smul.u32 8, %s16
      %s25 = sshll.u32 [#allocation3], 4
      %s26 = int_to_ptr.vmem [resolvable:$true] %s25
      %s27 = sshll.u32 %s24, 4
      %31 = dma.hbm_to_vmem [thread:$0]  (%p21), %s23, %s27, %s26, [#allocation4], 128, 128, 8
    $region5: #{tpu_custom_call.1} parent=1 // pred_fallthru
      _
    // Predicated region
    $region6: #{tpu_custom_call.1} parent=1 // pred_check
      _
    $region7: #{tpu_custom_call.1} parent=1 // pred_check_branch
      %33 = sbr.rel (0) target = $region9
    $region8: #{tpu_custom_call.1} parent=1 // pred_region
      %s34 = sadd.s32 0, 0
      %p35 = scmp.lt.s32.totalorder %s34, 0
      %s36 = scalar_select %p35, %s34, 0
      %s37 = smul.u32 4, %s36
      %s38 = ssub.s32 2, %s37
      %s39 = smul.u32 128, %s38
      %s41 = ssub.s32 512, %s39
      %42 = vsyncadd [#allocation7], %s41
      %p43 = scmp.ne.s32.totalorder 0, %s39
      %s44 = smul.addr %s37, 128
      %s45 = scalar_lea.hbm %s1, %s44
      %s46 = smul.u32 8, %s38
      %s47 = sshll.u32 [#allocation6], 4
      %s48 = int_to_ptr.vmem [resolvable:$true] %s47
      %s49 = sshll.u32 %s46, 4
      %53 = dma.hbm_to_vmem [thread:$0]  (%p43), %s45, %s49, %s48, [#allocation7], 128, 128, 8
    $region9: #{tpu_custom_call.1} parent=1 // pred_fallthru
      _
    // Predicated region
    $region10: #{tpu_custom_call.1} parent=1 // pred_check
      _
    $region11: #{tpu_custom_call.1} parent=1 // pred_check_branch
      %55 = sbr.rel (0) target = $region13
    $region12: #{tpu_custom_call.1} parent=1 // pred_region
      %56 = dma.done [#allocation4], 512
    $region13: #{tpu_custom_call.1} parent=1 // pred_fallthru
      _
    // Predicated region
    $region14: #{tpu_custom_call.1} parent=1 // pred_check
      _
    $region15: #{tpu_custom_call.1} parent=1 // pred_check_branch
      %58 = sbr.rel (0) target = $region17
    $region16: #{tpu_custom_call.1} parent=1 // pred_region
      %59 = dma.done [#allocation7], 512
    $region17: #{tpu_custom_call.1} parent=1 // pred_fallthru
      _
    %s60 = sadd.s32 0, 0
    %p61 = scmp.lt.s32.totalorder %s60, 0
    %s62 = scalar_select %p61, %s60, 0
    %s63 = smul.u32 4, %s62
    %s64 = ssub.s32 2, %s63
    %s65 = smul.u32 128, %s64
    %s66 = sadd.s32 0, 0
    %p67 = scmp.lt.s32.totalorder %s66, 0
    %s68 = scalar_select %p67, %s66, 0
    %s69 = smul.u32 4, %s68
    %s70 = ssub.s32 2, %s69
    %s71 = smul.u32 128, %s70
    %p72 = scmp.eq.s32.totalorder 0, 0
    // Predicated region
    $region18: #{tpu_custom_call.1} parent=1 // pred_check
      %p73 = pneg %p72
    $region19: #{tpu_custom_call.1} parent=1 // pred_check_branch
      %75 = sbr.rel (%p73) target = $region21
    $region20: #{tpu_custom_call.1} parent=1 // pred_region
      %76 = vst [vmem:[#allocation2] sm:$0xff] 0.0
    $region21: #{tpu_custom_call.1} parent=1 // pred_fallthru
      _
    %v77 = vld [vmem:[#allocation3] sm:$0xff]
    %v78 = vld [vmem:[#allocation3 + $0x8] sm:$0xff]
    %v79 = vld [vmem:[#allocation3 + $0x10] sm:$0xff]
    %v80 = vld [vmem:[#allocation3 + $0x18] sm:$0xff]
    %v81 = vld [vmem:[#allocation6] sm:$0xff]
    %v82 = vld [vmem:[#allocation6 + $0x8] sm:$0xff]
    %v83 = vld [vmem:[#allocation6 + $0x10] sm:$0xff]
    %v84 = vld [vmem:[#allocation6 + $0x18] sm:$0xff]
    %v85 = vsub.f32 %v77, %v81
    %v86 = vsub.f32 %v78, %v82
    %v87 = vsub.f32 %v79, %v83
    %v88 = vsub.f32 %v80, %v84
    %v89 = vand.u32 2147483647, %v85
    %v90 = vand.u32 2147483647, %v86
    %v91 = vand.u32 2147483647, %v87
    %v92 = vand.u32 2147483647, %v88
    %s93 = sadd.s32 0, 0
    %s94 = smul.u32 %s93, 32
    %s95 = sadd.s32 %s94, 32
    %p96 = scmp.gt.s32.totalorder %s95, 16
    %p97 = scmp.le.s32.totalorder %s95, 16
    // Predicated region
    $region22: #{tpu_custom_call.1} parent=1 // pred_check
      %p98 = pneg %p97
    $region23: #{tpu_custom_call.1} parent=1 // pred_check_branch
      %100 = sbr.rel (%p98) target = $region25
    $region24: #{tpu_custom_call.1} parent=1 // pred_region
      %v101 = vld [vmem:[#allocation2] sm:$0xff]
      %v102 = vadd.f32 %v89, %v90
      %v103 = vadd.f32 %v102, %v91
      %v104 = vadd.f32 %v103, %v92
      %v105 = vadd.f32 %v101, %v104
      %106 = vst [vmem:[#allocation2] sm:$0xff] %v105
    $region25: #{tpu_custom_call.1} parent=1 // pred_fallthru
      _
    // Predicated region
    $region26: #{tpu_custom_call.1} parent=1 // pred_check
      %p107 = pneg %p96
    $region27: #{tpu_custom_call.1} parent=1 // pred_check_branch
      %109 = sbr.rel (%p107) target = $region29
    $region28: #{tpu_custom_call.1} parent=1 // pred_region
      %s110 = ssub.s32 16, %s94
      %v111 = vlaneseq
      %v112 = vshrl.u32 %v111, 7
      %v113 = vadd.s32 %v112, 8
      %v114 = vadd.s32 %v112, 16
      %v115 = vadd.s32 %v112, 24
      %v116 = vstv %s110
      %vm117 = vcmp.lt.s32.totalorder %v112, %v116
      %vm118 = vcmp.lt.s32.totalorder %v113, %v116
      %vm119 = vcmp.lt.s32.totalorder %v114, %v116
      %vm120 = vcmp.lt.s32.totalorder %v115, %v116
      %v121 = vsel %vm117, %v89, 0.0
      %v122 = vsel %vm118, %v90, 0.0
      %v123 = vsel %vm119, %v91, 0.0
      %v124 = vsel %vm120, %v92, 0.0
      %v125 = vld [vmem:[#allocation2] sm:$0xff]
      %v126 = vadd.f32 %v121, %v122
      %v127 = vadd.f32 %v126, %v123
      %v128 = vadd.f32 %v127, %v124
      %v129 = vadd.f32 %v125, %v128
      %130 = vst [vmem:[#allocation2] sm:$0xff] %v129
    $region29: #{tpu_custom_call.1} parent=1 // pred_fallthru
      _
    // Predicated region
    $region30: #{tpu_custom_call.1} parent=1 // pred_check
      %p131 = pneg %p72
    $region31: #{tpu_custom_call.1} parent=1 // pred_check_branch
      %133 = sbr.rel (%p131) target = $region33
    $region32: #{tpu_custom_call.1} parent=1 // pred_region
      %v134 = vld [vmem:[#allocation2] sm:$0xff]
      %135 = vadd.xlane.f32.xlu0 %v134
      %v136 = vpop.xlane.xlu0 %135
      %v137 = vrot.slane %v136, 4
      %v138 = vadd.f32 %v136, %v137
      %v139 = vrot.slane %v138, 2
      %v140 = vadd.f32 %v138, %v139
      %v141 = vrot.slane %v140, 1
      %v142 = vadd.f32 %v140, %v141
      %s143 = vtos %v142
      %s144 = scalar_lea.smem [#allocation8], 0
      %145 = sst [smem:[%s144]] %s143
    $region33: #{tpu_custom_call.1} parent=1 // pred_fallthru
      _
    // Predicated region
    $region34: #{tpu_custom_call.1} parent=1 // pred_check
      _
    $region35: #{tpu_custom_call.1} parent=1 // pred_check_branch
      %147 = sbr.rel (0) target = $region37
    $region36: #{tpu_custom_call.1} parent=1 // pred_region
      %s149 = ssub.s32 16, 16
      %150 = vsyncadd [#allocation5], %s149
      %153 = dma.smem_to_hbm [#allocation8], 16, %s2, [#allocation5]
    $region37: #{tpu_custom_call.1} parent=1 // pred_fallthru
      _
    // Predicated region
    $region38: #{tpu_custom_call.1} parent=1 // pred_check
      _
    $region39: #{tpu_custom_call.1} parent=1 // pred_check_branch
      %155 = sbr.rel (0) target = $region41
    $region40: #{tpu_custom_call.1} parent=1 // pred_region
      %156 = dma.done [#allocation5], 16
    $region41: #{tpu_custom_call.1} parent=1 // pred_fallthru
      _
    %157 = sfence
    %158 = vsyncpa [#allocation4], 1
    %159 = vsyncpa [#allocation7], 1
    %160 = vsyncpa [#allocation5], 1

</llo_original>
